<compile_context>
chip_gen: v5e
topology: v5e:2x2
jax: 0.10.0
libtpu: 0.0.40
codegen_flags: <defaults>
</compile_context>

<pallas_src>
import numpy as np
import jax
import jax.numpy as jnp
from jax import lax
from jax.experimental import pallas as pl
from jax.experimental.pallas import tpu as pltpu

EPS = 1e-5            # nn.InstanceNorm2d default eps
H = W = 16            # spatial size (img_size = (4, 16, 16))
HW = H * W
# 3x3 tap order t = ky*3 + kx, spatial offsets (dy, dx) = (ky-1, kx-1)
TAPS = [(ky - 1, kx - 1) for ky in range(3) for kx in range(3)]
CENTER_TAP = TAPS.index((0, 0))


def _border_mask_np():
    """(9, HW) float 0/1 masks: position valid iff the tap stays inside the image."""
    p = np.arange(HW)
    row, col = p // W, p % W
    m = np.ones((9, HW), np.float32)
    for t, (dy, dx) in enumerate(TAPS):
        ok = np.ones(HW, bool)
        if dy < 0:
            ok &= row >= -dy
        elif dy > 0:
            ok &= row < H - dy
        if dx < 0:
            ok &= col >= -dx
        elif dx > 0:
            ok &= col < W - dx
        m[t] = ok.astype(np.float32)
    return m


_BASE_MASK = _border_mask_np()   # hoisted: computed once at import time


def _norm_conv_relu(a, w, b, masks):
    """InstanceNorm2d(affine=False) -> 3x3 'same' Conv2d (one im2col matmul) -> ReLU.

    a:     (Cin, L)   f32 activations, L = B*HW (B images packed along lanes)
    w:     (Cout, 9*Cin) f32 weights (tap-major, channel-minor columns)
    b:     (Cout, 1)  f32 bias column
    masks: (9, L)     f32 0/1 per-tap border masks (also mask cross-image wrap)
    """
    cin, L = a.shape
    nb = L // HW

    # InstanceNorm per packed image segment. sum and sum-of-squares are
    # independent lane reductions, so their XLU pushes can overlap.
    segs = []
    for s in range(nb):
        seg = a[:, s * HW:(s + 1) * HW]                 # lane-aligned static slice
        s1 = jnp.sum(seg, axis=1, keepdims=True)
        s2 = jnp.sum(seg * seg, axis=1, keepdims=True)
        mean = s1 * (1.0 / HW)
        var = jnp.maximum(s2 * (1.0 / HW) - mean * mean, 0.0)   # clamp cancellation
        segs.append((seg - mean) * lax.rsqrt(var + EPS))
    an = segs[0] if nb == 1 else jnp.concatenate(segs, axis=1)  # (Cin, L)

    # im2col in registers: 9 lane-rolled + masked copies concatenated on sublanes.
    pieces = []
    for t, (dy, dx) in enumerate(TAPS):
        off = dy * W + dx
        piece = an if off == 0 else pltpu.roll(an, (-off) % L, axis=1)
        if t != CENTER_TAP:                              # center tap never clipped
            piece = piece * masks[t:t + 1, :]
        pieces.append(piece)
    patches = jnp.concatenate(pieces, axis=0)            # (9*Cin, L)

    # Single MXU matmul per layer: (Cout, 9*Cin) @ (9*Cin, L).
    y = jnp.dot(w, patches, preferred_element_type=jnp.float32) + b
    return jnp.maximum(y, 0.0)


def fused_forward_kernel(x_ref, m_ref, w1_ref, b1_ref, w2_ref, b2_ref,
                         lwt_ref, lb_ref, o_ref):
    masks = m_ref[...]                                    # (9, L)
    a = x_ref[...]                                        # (C0, L) f32
    a = _norm_conv_relu(a, w1_ref[...], b1_ref[...], masks)   # (C1, L)
    a = _norm_conv_relu(a, w2_ref[...], b2_ref[...], masks)   # (C2, L)

    # AdaptiveAvgPool2d((1,1)) per packed image -> (C2, B)
    _, L = a.shape
    nb = L // HW
    cols = [jnp.sum(a[:, s * HW:(s + 1) * HW], axis=1, keepdims=True) * (1.0 / HW)
            for s in range(nb)]
    pooled = cols[0] if nb == 1 else jnp.concatenate(cols, axis=1)   # (C2, B)

    # TODO(synk): Dropout(p=0.1) is identity at inference; training-mode mask not implemented.
    # Lane-dense head: (B, C2) @ (C2, nc) + (1, nc) -> (B, nc)
    logits = jnp.dot(pooled.T, lwt_ref[...],
                     preferred_element_type=jnp.float32) + lb_ref[...]
    o_ref[...] = logits                                   # block (B, nc)


def prepare_params(conv_params, lin_w, lin_b):
    """One-time parameter preparation (hoisted out of the forward pass)."""
    prepped = []
    for (w_oihw, bias) in conv_params:
        cout, cin, kh, kw = w_oihw.shape
        # (Cout, Cin, 3, 3) -> (Cout, 3, 3, Cin) -> (Cout, 9*Cin); column = t*Cin + c
        w2d = jnp.transpose(w_oihw, (0, 2, 3, 1)).reshape(cout, kh * kw * cin)
        prepped.append((w2d.astype(jnp.float32),
                        bias.reshape(cout, 1).astype(jnp.float32)))
    lwt = jnp.transpose(lin_w).astype(jnp.float32)        # (C_last, num_classes)
    lb_row = lin_b.reshape(1, -1).astype(jnp.float32)     # (1, num_classes)
    return (prepped[0][0], prepped[0][1],
            prepped[1][0], prepped[1][1], lwt, lb_row)


@jax.jit
def allconvnet_forward(x_nchw, w1, b1, w2, b2, lwt, lb_row):
    n, c0 = x_nchw.shape[0], x_nchw.shape[1]
    c1, c2 = w1.shape[0], w2.shape[0]
    nc = lwt.shape[1]

    # v7x has 2 TensorCores: keep >= 2 grid steps when possible so
    # dimension_semantics=("parallel",) spreads them; extra step on v5e/v6e costs
    # only ~0.35 us. All images of a step are packed along the lane axis.
    num_steps = 2 if n >= 2 else 1
    b_per_step = -(-n // num_steps)
    n_pad = num_steps * b_per_step
    lanes = b_per_step * HW

    x_flat = x_nchw.reshape(n, c0, HW).astype(jnp.float32)
    if n_pad != n:      # pad with zero images (InstanceNorm of zeros stays zero)
        x_flat = jnp.concatenate(
            [x_flat, jnp.zeros((n_pad - n, c0, HW), jnp.float32)], axis=0)
    # (N, C, HW) -> (C, N*HW): lane-dense packing, done once in XLA outside the kernel.
    x_packed = jnp.transpose(x_flat, (1, 0, 2)).reshape(c0, n_pad * HW)

    # Border masks tiled to the packed lane width; compile-time constant.
    masks = jnp.asarray(np.tile(_BASE_MASK, (1, b_per_step)))       # (9, lanes)

    out = pl.pallas_call(
        fused_forward_kernel,
        out_shape=jax.ShapeDtypeStruct((num_steps, b_per_step, nc), jnp.float32),
        grid_spec=pltpu.PrefetchScalarGridSpec(
            num_scalar_prefetch=0,
            grid=(num_steps,),
            in_specs=[
                pl.BlockSpec((c0, lanes), lambda i: (0, i)),     # packed images
                pl.BlockSpec((9, lanes), lambda i: (0, 0)),      # border masks
                pl.BlockSpec((c1, 9 * c0), lambda i: (0, 0)),    # conv1 weight
                pl.BlockSpec((c1, 1), lambda i: (0, 0)),         # conv1 bias
                pl.BlockSpec((c2, 9 * c1), lambda i: (0, 0)),    # conv2 weight
                pl.BlockSpec((c2, 1), lambda i: (0, 0)),         # conv2 bias
                pl.BlockSpec((c2, nc), lambda i: (0, 0)),        # linear weight^T
                pl.BlockSpec((1, nc), lambda i: (0, 0)),         # linear bias row
            ],
            out_specs=pl.BlockSpec((pl.Squeezed(), b_per_step, nc),
                                   lambda i: (i, 0, 0)),
        ),
        # Per-step VMEM footprint < 1 MiB -> no vmem_limit_bytes needed (even v7x).
        compiler_params=pltpu.CompilerParams(
            dimension_semantics=("parallel",)),
    )(x_packed, masks, w1, b1, w2, b2, lwt, lb_row)
    return out.reshape(n_pad, nc)[:n]


# Pure-JAX reference for verification
def reference_forward(x_nchw, conv_params, lin_w, lin_b):
    x = x_nchw.astype(jnp.float32)
    for (w, b) in conv_params:
        mean = jnp.mean(x, axis=(2, 3), keepdims=True)
        var = jnp.mean((x - mean) ** 2, axis=(2, 3), keepdims=True)
        xn = (x - mean) / jnp.sqrt(var + EPS)
        y = jax.lax.conv_general_dilated(
            xn, w, window_strides=(1, 1), padding=((1, 1), (1, 1)),
            dimension_numbers=('NCHW', 'OIHW', 'NCHW'))
        y = y + b[None, :, None, None]
        x = jnp.maximum(y, 0.0)
    pooled = jnp.mean(x, axis=(2, 3))
    return pooled @ lin_w.T + lin_b


if __name__ == "__main__":
    # Config
    N, C0 = 2, 4
    channels = [8, 16]
    num_classes = 10

    key = jax.random.PRNGKey(0)
    key, kx = jax.random.split(key)
    x = jax.random.normal(kx, (N, C0, H, W), dtype=jnp.float32)

    # Deterministic parameter init (PyTorch-style uniform bounds)
    conv_params = []
    in_ch = C0
    for out_ch in channels:
        key, k_w, k_b = jax.random.split(key, 3)
        fan_in = in_ch * 3 * 3
        bound = 1.0 / (fan_in ** 0.5)
        w = jax.random.uniform(k_w, (out_ch, in_ch, 3, 3),
                               minval=-bound, maxval=bound, dtype=jnp.float32)
        b = jax.random.uniform(k_b, (out_ch,),
                               minval=-bound, maxval=bound, dtype=jnp.float32)
        conv_params.append((w, b))
        in_ch = out_ch

    key, k_w, k_b = jax.random.split(key, 3)
    bound = 1.0 / (in_ch ** 0.5)
    lin_w = jax.random.uniform(k_w, (num_classes, in_ch),
                               minval=-bound, maxval=bound, dtype=jnp.float32)
    lin_b = jax.random.uniform(k_b, (num_classes,),
                               minval=-bound, maxval=bound, dtype=jnp.float32)

    # One-time parameter prep (kept out of the jitted forward).
    prepped = prepare_params(conv_params, lin_w, lin_b)

    # Primary check: batch = 2 (one image per grid step, grid of 2 for v7x's 2 TCs).
    out = jax.block_until_ready(allconvnet_forward(x, *prepped))
    ref = jax.block_until_ready(reference_forward(x, conv_params, lin_w, lin_b))
    assert out.shape == (N, num_classes), out.shape
    assert jnp.allclose(out, ref, rtol=1e-4, atol=1e-4), (
        f"max abs diff {float(jnp.max(jnp.abs(out - ref)))}")

    # Secondary check: odd batch exercises lane-packing (B=3 images per step) + padding.
    key, kx2 = jax.random.split(key)
    x2 = jax.random.normal(kx2, (5, C0, H, W), dtype=jnp.float32)
    out2 = jax.block_until_ready(allconvnet_forward(x2, *prepped))
    ref2 = jax.block_until_ready(reference_forward(x2, conv_params, lin_w, lin_b))
    assert out2.shape == (5, num_classes), out2.shape
    assert jnp.allclose(out2, ref2, rtol=1e-4, atol=1e-4), (
        f"max abs diff {float(jnp.max(jnp.abs(out2 - ref2)))}")

    print("KERNEL_OK")
</pallas_src>

<mosaic_0001>
module attributes {stable_mosaic.version = 11 : i64} {
  func.func @fused_forward_kernel(%arg0: i32, %arg1: memref<4x256xf32, #tpu.memory_space<vmem>>, %arg2: memref<9x256xf32, #tpu.memory_space<vmem>>, %arg3: memref<8x36xf32, #tpu.memory_space<vmem>>, %arg4: memref<8x1xf32, #tpu.memory_space<vmem>>, %arg5: memref<16x72xf32, #tpu.memory_space<vmem>>, %arg6: memref<16x1xf32, #tpu.memory_space<vmem>>, %arg7: memref<16x10xf32, #tpu.memory_space<vmem>>, %arg8: memref<1x10xf32, #tpu.memory_space<vmem>>, %arg9: memref<1x1x10xf32, #tpu.memory_space<vmem>>) attributes {dimension_semantics = [#tpu.dimension_semantics<parallel>], iteration_bounds = array<i64: 2>, scalar_prefetch = 0 : i64, scratch_operands = 0 : i64, tpu.core_type = #tpu.core_type<tc>, window_params = [{transform_indices = @transform_0, window_bounds = array<i64: 4, 256>}, {pipeline_mode = #tpu.pipeline_mode<synchronous>, transform_indices = @transform_1, window_bounds = array<i64: 9, 256>}, {pipeline_mode = #tpu.pipeline_mode<synchronous>, transform_indices = @transform_2, window_bounds = array<i64: 8, 36>}, {pipeline_mode = #tpu.pipeline_mode<synchronous>, transform_indices = @transform_3, window_bounds = array<i64: 8, 1>}, {pipeline_mode = #tpu.pipeline_mode<synchronous>, transform_indices = @transform_4, window_bounds = array<i64: 16, 72>}, {pipeline_mode = #tpu.pipeline_mode<synchronous>, transform_indices = @transform_5, window_bounds = array<i64: 16, 1>}, {pipeline_mode = #tpu.pipeline_mode<synchronous>, transform_indices = @transform_6, window_bounds = array<i64: 16, 10>}, {pipeline_mode = #tpu.pipeline_mode<synchronous>, transform_indices = @transform_7, window_bounds = array<i64: 1, 10>}, {transform_indices = @transform_8, window_bounds = array<i64: 1, 1, 10>}]} {
    %c0 = arith.constant 0 : index
    %c0_0 = arith.constant 0 : index
    %0 = vector.load %arg2[%c0, %c0_0] : memref<9x256xf32, #tpu.memory_space<vmem>>, vector<9x256xf32>
    %c0_1 = arith.constant 0 : index
    %c0_2 = arith.constant 0 : index
    %1 = vector.load %arg1[%c0_1, %c0_2] : memref<4x256xf32, #tpu.memory_space<vmem>>, vector<4x256xf32>
    %c0_3 = arith.constant 0 : index
    %c0_4 = arith.constant 0 : index
    %2 = vector.load %arg3[%c0_3, %c0_4] : memref<8x36xf32, #tpu.memory_space<vmem>>, vector<8x36xf32>
    %c0_5 = arith.constant 0 : index
    %c0_6 = arith.constant 0 : index
    %3 = vector.load %arg4[%c0_5, %c0_6] : memref<8x1xf32, #tpu.memory_space<vmem>>, vector<8x1xf32>
    %cst = arith.constant dense<0.000000e+00> : vector<4xf32>
    %4 = vector.multi_reduction <add>, %1, %cst [1] : vector<4x256xf32> to vector<4xf32>
    %5 = vector.shape_cast %4 : vector<4xf32> to vector<4x1xf32>
    %6 = arith.mulf %1, %1 : vector<4x256xf32>
    %cst_7 = arith.constant dense<0.000000e+00> : vector<4xf32>
    %7 = vector.multi_reduction <add>, %6, %cst_7 [1] : vector<4x256xf32> to vector<4xf32>
    %8 = vector.shape_cast %7 : vector<4xf32> to vector<4x1xf32>
    %cst_8 = arith.constant 3.906250e-03 : f32
    %9 = vector.broadcast %cst_8 : f32 to vector<4x1xf32>
    %10 = arith.mulf %5, %9 : vector<4x1xf32>
    %cst_9 = arith.constant 3.906250e-03 : f32
    %11 = vector.broadcast %cst_9 : f32 to vector<4x1xf32>
    %12 = arith.mulf %8, %11 : vector<4x1xf32>
    %13 = arith.mulf %10, %10 : vector<4x1xf32>
    %14 = arith.subf %12, %13 : vector<4x1xf32>
    %cst_10 = arith.constant 0.000000e+00 : f32
    %15 = vector.broadcast %cst_10 : f32 to vector<4x1xf32>
    %16 = arith.maximumf %14, %15 : vector<4x1xf32>
    %17 = vector.broadcast %10 : vector<4x1xf32> to vector<4x256xf32>
    %18 = arith.subf %1, %17 : vector<4x256xf32>
    %cst_11 = arith.constant 9.99999974E-6 : f32
    %19 = vector.broadcast %cst_11 : f32 to vector<4x1xf32>
    %20 = arith.addf %16, %19 : vector<4x1xf32>
    %21 = math.rsqrt %20 : vector<4x1xf32>
    %22 = vector.broadcast %21 : vector<4x1xf32> to vector<4x256xf32>
    %23 = arith.mulf %18, %22 : vector<4x256xf32>
    %c17_i32 = arith.constant 17 : i32
    %24 = tpu.dynamic_rotate %23 by %c17_i32 dim 1 : vector<4x256xf32>, i32 -> vector<4x256xf32>
    %25 = vector.extract_strided_slice %0 {offsets = [0, 0], sizes = [1, 256], strides = [1, 1]} : vector<9x256xf32> to vector<1x256xf32>
    %26 = vector.broadcast %25 : vector<1x256xf32> to vector<4x256xf32>
    %27 = arith.mulf %24, %26 : vector<4x256xf32>
    %c16_i32 = arith.constant 16 : i32
    %28 = tpu.dynamic_rotate %23 by %c16_i32 dim 1 : vector<4x256xf32>, i32 -> vector<4x256xf32>
    %29 = vector.extract_strided_slice %0 {offsets = [1, 0], sizes = [1, 256], strides = [1, 1]} : vector<9x256xf32> to vector<1x256xf32>
    %30 = vector.broadcast %29 : vector<1x256xf32> to vector<4x256xf32>
    %31 = arith.mulf %28, %30 : vector<4x256xf32>
    %c15_i32 = arith.constant 15 : i32
    %32 = tpu.dynamic_rotate %23 by %c15_i32 dim 1 : vector<4x256xf32>, i32 -> vector<4x256xf32>
    %33 = vector.extract_strided_slice %0 {offsets = [2, 0], sizes = [1, 256], strides = [1, 1]} : vector<9x256xf32> to vector<1x256xf32>
    %34 = vector.broadcast %33 : vector<1x256xf32> to vector<4x256xf32>
    %35 = arith.mulf %32, %34 : vector<4x256xf32>
    %c1_i32 = arith.constant 1 : i32
    %36 = tpu.dynamic_rotate %23 by %c1_i32 dim 1 : vector<4x256xf32>, i32 -> vector<4x256xf32>
    %37 = vector.extract_strided_slice %0 {offsets = [3, 0], sizes = [1, 256], strides = [1, 1]} : vector<9x256xf32> to vector<1x256xf32>
    %38 = vector.broadcast %37 : vector<1x256xf32> to vector<4x256xf32>
    %39 = arith.mulf %36, %38 : vector<4x256xf32>
    %c255_i32 = arith.constant 255 : i32
    %40 = tpu.dynamic_rotate %23 by %c255_i32 dim 1 : vector<4x256xf32>, i32 -> vector<4x256xf32>
    %41 = vector.extract_strided_slice %0 {offsets = [5, 0], sizes = [1, 256], strides = [1, 1]} : vector<9x256xf32> to vector<1x256xf32>
    %42 = vector.broadcast %41 : vector<1x256xf32> to vector<4x256xf32>
    %43 = arith.mulf %40, %42 : vector<4x256xf32>
    %c241_i32 = arith.constant 241 : i32
    %44 = tpu.dynamic_rotate %23 by %c241_i32 dim 1 : vector<4x256xf32>, i32 -> vector<4x256xf32>
    %45 = vector.extract_strided_slice %0 {offsets = [6, 0], sizes = [1, 256], strides = [1, 1]} : vector<9x256xf32> to vector<1x256xf32>
    %46 = vector.broadcast %45 : vector<1x256xf32> to vector<4x256xf32>
    %47 = arith.mulf %44, %46 : vector<4x256xf32>
    %c240_i32 = arith.constant 240 : i32
    %48 = tpu.dynamic_rotate %23 by %c240_i32 dim 1 : vector<4x256xf32>, i32 -> vector<4x256xf32>
    %49 = vector.extract_strided_slice %0 {offsets = [7, 0], sizes = [1, 256], strides = [1, 1]} : vector<9x256xf32> to vector<1x256xf32>
    %50 = vector.broadcast %49 : vector<1x256xf32> to vector<4x256xf32>
    %51 = arith.mulf %48, %50 : vector<4x256xf32>
    %c239_i32 = arith.constant 239 : i32
    %52 = tpu.dynamic_rotate %23 by %c239_i32 dim 1 : vector<4x256xf32>, i32 -> vector<4x256xf32>
    %53 = vector.extract_strided_slice %0 {offsets = [8, 0], sizes = [1, 256], strides = [1, 1]} : vector<9x256xf32> to vector<1x256xf32>
    %54 = vector.broadcast %53 : vector<1x256xf32> to vector<4x256xf32>
    %55 = arith.mulf %52, %54 : vector<4x256xf32>
    %56 = tpu.concatenate %27, %31, %35, %39, %23, %43, %47, %51, %55 in 0 : vector<4x256xf32>, vector<4x256xf32>, vector<4x256xf32>, vector<4x256xf32>, vector<4x256xf32>, vector<4x256xf32>, vector<4x256xf32>, vector<4x256xf32>, vector<4x256xf32> -> vector<36x256xf32>
    %cst_12 = arith.constant dense<0.000000e+00> : vector<8x256xf32>
    %57 = tpu.matmul %2, %56, %cst_12 {dimension_numbers = #tpu.dot_dimension_numbers<[1], [0], [0], [1], [0, 0, 1, 1], [], []>} : vector<8x36xf32>, vector<36x256xf32>, vector<8x256xf32> -> vector<8x256xf32>
    %58 = vector.broadcast %3 : vector<8x1xf32> to vector<8x256xf32>
    %59 = arith.addf %57, %58 : vector<8x256xf32>
    %cst_13 = arith.constant 0.000000e+00 : f32
    %60 = vector.broadcast %cst_13 : f32 to vector<8x256xf32>
    %61 = arith.maximumf %59, %60 : vector<8x256xf32>
    %c0_14 = arith.constant 0 : index
    %c0_15 = arith.constant 0 : index
    %62 = vector.load %arg5[%c0_14, %c0_15] : memref<16x72xf32, #tpu.memory_space<vmem>>, vector<16x72xf32>
    %c0_16 = arith.constant 0 : index
    %c0_17 = arith.constant 0 : index
    %63 = vector.load %arg6[%c0_16, %c0_17] : memref<16x1xf32, #tpu.memory_space<vmem>>, vector<16x1xf32>
    %cst_18 = arith.constant dense<0.000000e+00> : vector<8xf32>
    %64 = vector.multi_reduction <add>, %61, %cst_18 [1] : vector<8x256xf32> to vector<8xf32>
    %65 = vector.shape_cast %64 : vector<8xf32> to vector<8x1xf32>
    %66 = arith.mulf %61, %61 : vector<8x256xf32>
    %cst_19 = arith.constant dense<0.000000e+00> : vector<8xf32>
    %67 = vector.multi_reduction <add>, %66, %cst_19 [1] : vector<8x256xf32> to vector<8xf32>
    %68 = vector.shape_cast %67 : vector<8xf32> to vector<8x1xf32>
    %cst_20 = arith.constant 3.906250e-03 : f32
    %69 = vector.broadcast %cst_20 : f32 to vector<8x1xf32>
    %70 = arith.mulf %65, %69 : vector<8x1xf32>
    %cst_21 = arith.constant 3.906250e-03 : f32
    %71 = vector.broadcast %cst_21 : f32 to vector<8x1xf32>
    %72 = arith.mulf %68, %71 : vector<8x1xf32>
    %73 = arith.mulf %70, %70 : vector<8x1xf32>
    %74 = arith.subf %72, %73 : vector<8x1xf32>
    %cst_22 = arith.constant 0.000000e+00 : f32
    %75 = vector.broadcast %cst_22 : f32 to vector<8x1xf32>
    %76 = arith.maximumf %74, %75 : vector<8x1xf32>
    %77 = vector.broadcast %70 : vector<8x1xf32> to vector<8x256xf32>
    %78 = arith.subf %61, %77 : vector<8x256xf32>
    %cst_23 = arith.constant 9.99999974E-6 : f32
    %79 = vector.broadcast %cst_23 : f32 to vector<8x1xf32>
    %80 = arith.addf %76, %79 : vector<8x1xf32>
    %81 = math.rsqrt %80 : vector<8x1xf32>
    %82 = vector.broadcast %81 : vector<8x1xf32> to vector<8x256xf32>
    %83 = arith.mulf %78, %82 : vector<8x256xf32>
    %c17_i32_24 = arith.constant 17 : i32
    %84 = tpu.dynamic_rotate %83 by %c17_i32_24 dim 1 : vector<8x256xf32>, i32 -> vector<8x256xf32>
    %85 = vector.extract_strided_slice %0 {offsets = [0, 0], sizes = [1, 256], strides = [1, 1]} : vector<9x256xf32> to vector<1x256xf32>
    %86 = vector.broadcast %85 : vector<1x256xf32> to vector<8x256xf32>
    %87 = arith.mulf %84, %86 : vector<8x256xf32>
    %c16_i32_25 = arith.constant 16 : i32
    %88 = tpu.dynamic_rotate %83 by %c16_i32_25 dim 1 : vector<8x256xf32>, i32 -> vector<8x256xf32>
    %89 = vector.extract_strided_slice %0 {offsets = [1, 0], sizes = [1, 256], strides = [1, 1]} : vector<9x256xf32> to vector<1x256xf32>
    %90 = vector.broadcast %89 : vector<1x256xf32> to vector<8x256xf32>
    %91 = arith.mulf %88, %90 : vector<8x256xf32>
    %c15_i32_26 = arith.constant 15 : i32
    %92 = tpu.dynamic_rotate %83 by %c15_i32_26 dim 1 : vector<8x256xf32>, i32 -> vector<8x256xf32>
    %93 = vector.extract_strided_slice %0 {offsets = [2, 0], sizes = [1, 256], strides = [1, 1]} : vector<9x256xf32> to vector<1x256xf32>
    %94 = vector.broadcast %93 : vector<1x256xf32> to vector<8x256xf32>
    %95 = arith.mulf %92, %94 : vector<8x256xf32>
    %c1_i32_27 = arith.constant 1 : i32
    %96 = tpu.dynamic_rotate %83 by %c1_i32_27 dim 1 : vector<8x256xf32>, i32 -> vector<8x256xf32>
    %97 = vector.extract_strided_slice %0 {offsets = [3, 0], sizes = [1, 256], strides = [1, 1]} : vector<9x256xf32> to vector<1x256xf32>
    %98 = vector.broadcast %97 : vector<1x256xf32> to vector<8x256xf32>
    %99 = arith.mulf %96, %98 : vector<8x256xf32>
    %c255_i32_28 = arith.constant 255 : i32
    %100 = tpu.dynamic_rotate %83 by %c255_i32_28 dim 1 : vector<8x256xf32>, i32 -> vector<8x256xf32>
    %101 = vector.extract_strided_slice %0 {offsets = [5, 0], sizes = [1, 256], strides = [1, 1]} : vector<9x256xf32> to vector<1x256xf32>
    %102 = vector.broadcast %101 : vector<1x256xf32> to vector<8x256xf32>
    %103 = arith.mulf %100, %102 : vector<8x256xf32>
    %c241_i32_29 = arith.constant 241 : i32
    %104 = tpu.dynamic_rotate %83 by %c241_i32_29 dim 1 : vector<8x256xf32>, i32 -> vector<8x256xf32>
    %105 = vector.extract_strided_slice %0 {offsets = [6, 0], sizes = [1, 256], strides = [1, 1]} : vector<9x256xf32> to vector<1x256xf32>
    %106 = vector.broadcast %105 : vector<1x256xf32> to vector<8x256xf32>
    %107 = arith.mulf %104, %106 : vector<8x256xf32>
    %c240_i32_30 = arith.constant 240 : i32
    %108 = tpu.dynamic_rotate %83 by %c240_i32_30 dim 1 : vector<8x256xf32>, i32 -> vector<8x256xf32>
    %109 = vector.extract_strided_slice %0 {offsets = [7, 0], sizes = [1, 256], strides = [1, 1]} : vector<9x256xf32> to vector<1x256xf32>
    %110 = vector.broadcast %109 : vector<1x256xf32> to vector<8x256xf32>
    %111 = arith.mulf %108, %110 : vector<8x256xf32>
    %c239_i32_31 = arith.constant 239 : i32
    %112 = tpu.dynamic_rotate %83 by %c239_i32_31 dim 1 : vector<8x256xf32>, i32 -> vector<8x256xf32>
    %113 = vector.extract_strided_slice %0 {offsets = [8, 0], sizes = [1, 256], strides = [1, 1]} : vector<9x256xf32> to vector<1x256xf32>
    %114 = vector.broadcast %113 : vector<1x256xf32> to vector<8x256xf32>
    %115 = arith.mulf %112, %114 : vector<8x256xf32>
    %116 = tpu.concatenate %87, %91, %95, %99, %83, %103, %107, %111, %115 in 0 : vector<8x256xf32>, vector<8x256xf32>, vector<8x256xf32>, vector<8x256xf32>, vector<8x256xf32>, vector<8x256xf32>, vector<8x256xf32>, vector<8x256xf32>, vector<8x256xf32> -> vector<72x256xf32>
    %cst_32 = arith.constant dense<0.000000e+00> : vector<16x256xf32>
    %117 = tpu.matmul %62, %116, %cst_32 {dimension_numbers = #tpu.dot_dimension_numbers<[1], [0], [0], [1], [0, 0, 1, 1], [], []>} : vector<16x72xf32>, vector<72x256xf32>, vector<16x256xf32> -> vector<16x256xf32>
    %118 = vector.broadcast %63 : vector<16x1xf32> to vector<16x256xf32>
    %119 = arith.addf %117, %118 : vector<16x256xf32>
    %cst_33 = arith.constant 0.000000e+00 : f32
    %120 = vector.broadcast %cst_33 : f32 to vector<16x256xf32>
    %121 = arith.maximumf %119, %120 : vector<16x256xf32>
    %cst_34 = arith.constant dense<0.000000e+00> : vector<16xf32>
    %122 = vector.multi_reduction <add>, %121, %cst_34 [1] : vector<16x256xf32> to vector<16xf32>
    %123 = vector.shape_cast %122 : vector<16xf32> to vector<16x1xf32>
    %cst_35 = arith.constant 3.906250e-03 : f32
    %124 = vector.broadcast %cst_35 : f32 to vector<16x1xf32>
    %125 = arith.mulf %123, %124 : vector<16x1xf32>
    %126 = tpu.transpose %125, [1, 0] : vector<16x1xf32> -> vector<1x16xf32>
    %c0_36 = arith.constant 0 : index
    %c0_37 = arith.constant 0 : index
    %127 = vector.load %arg7[%c0_36, %c0_37] : memref<16x10xf32, #tpu.memory_space<vmem>>, vector<16x10xf32>
    %cst_38 = arith.constant dense<0.000000e+00> : vector<1x10xf32>
    %128 = tpu.matmul %126, %127, %cst_38 {dimension_numbers = #tpu.dot_dimension_numbers<[1], [0], [0], [1], [0, 0, 1, 1], [], []>} : vector<1x16xf32>, vector<16x10xf32>, vector<1x10xf32> -> vector<1x10xf32>
    %c0_39 = arith.constant 0 : index
    %c0_40 = arith.constant 0 : index
    %129 = vector.load %arg8[%c0_39, %c0_40] : memref<1x10xf32, #tpu.memory_space<vmem>>, vector<1x10xf32>
    %130 = arith.addf %128, %129 : vector<1x10xf32>
    %c0_41 = arith.constant 0 : index
    %c0_42 = arith.constant 0 : index
    %c0_43 = arith.constant 0 : index
    %131 = vector.load %arg9[%c0_41, %c0_42, %c0_43] : memref<1x1x10xf32, #tpu.memory_space<vmem>>, vector<1x1x10xf32>
    %132 = vector.shape_cast %131 : vector<1x1x10xf32> to vector<1x10xf32>
    %133 = vector.shape_cast %130 : vector<1x10xf32> to vector<1x1x10xf32>
    tpu.vector_store %arg9[%c0_41, %c0_42, %c0_43], %133 {strides = array<i32>} : memref<1x1x10xf32, #tpu.memory_space<vmem>>, vector<1x1x10xf32>,
    return
  }
  func.func @transform_0(%arg0: i32) -> (i32, i32) {
    %c0_i32 = arith.constant 0 : i32
    %c0_i32_0 = arith.constant 0 : i32
    return %c0_i32, %arg0 : i32, i32
  }
  func.func @transform_1(%arg0: i32) -> (i32, i32) {
    %c0_i32 = arith.constant 0 : i32
    %c0_i32_0 = arith.constant 0 : i32
    %c0_i32_1 = arith.constant 0 : i32
    return %c0_i32, %c0_i32_0 : i32, i32
  }
  func.func @transform_2(%arg0: i32) -> (i32, i32) {
    %c0_i32 = arith.constant 0 : i32
    %c0_i32_0 = arith.constant 0 : i32
    %c0_i32_1 = arith.constant 0 : i32
    return %c0_i32, %c0_i32_0 : i32, i32
  }
  func.func @transform_3(%arg0: i32) -> (i32, i32) {
    %c0_i32 = arith.constant 0 : i32
    %c0_i32_0 = arith.constant 0 : i32
    %c0_i32_1 = arith.constant 0 : i32
    return %c0_i32, %c0_i32_0 : i32, i32
  }
  func.func @transform_4(%arg0: i32) -> (i32, i32) {
    %c0_i32 = arith.constant 0 : i32
    %c0_i32_0 = arith.constant 0 : i32
    %c0_i32_1 = arith.constant 0 : i32
    return %c0_i32, %c0_i32_0 : i32, i32
  }
  func.func @transform_5(%arg0: i32) -> (i32, i32) {
    %c0_i32 = arith.constant 0 : i32
    %c0_i32_0 = arith.constant 0 : i32
    %c0_i32_1 = arith.constant 0 : i32
    return %c0_i32, %c0_i32_0 : i32, i32
  }
  func.func @transform_6(%arg0: i32) -> (i32, i32) {
    %c0_i32 = arith.constant 0 : i32
    %c0_i32_0 = arith.constant 0 : i32
    %c0_i32_1 = arith.constant 0 : i32
    return %c0_i32, %c0_i32_0 : i32, i32
  }
  func.func @transform_7(%arg0: i32) -> (i32, i32) {
    %c0_i32 = arith.constant 0 : i32
    %c0_i32_0 = arith.constant 0 : i32
    %c0_i32_1 = arith.constant 0 : i32
    return %c0_i32, %c0_i32_0 : i32, i32
  }
  func.func @transform_8(%arg0: i32) -> (i32, i32, i32) {
    %c0_i32 = arith.constant 0 : i32
    %c0_i32_0 = arith.constant 0 : i32
    %c0_i32_1 = arith.constant 0 : i32
    return %arg0, %c0_i32, %c0_i32_0 : i32, i32, i32
  }
}

</mosaic_0001>

<llo_original>
// kernel: allconvnet_forward.1
$region0: #{allconvnet_forward.1}
  #allocation0 [shape = 'u32[]', space=smem, size = 0x4, offset = 0x4, fixed_abs, tag = 'smem constant byte address 0x4 - core index']
  #allocation1 [shape = 'u32[72,128]{1,0:T(1,128)}', space=vmem, size = 0x9000, scoped, tag = 'internal scratch']
  %s0 = inlined_call_operand.vmem [shape: f32[4,512], index: 0, kind: input, shape index: {}]
  %s1 = inlined_call_operand.vmem [shape: f32[9,256], index: 1, kind: input, shape index: {}]
  %s2 = inlined_call_operand.vmem [shape: f32[8,36], index: 2, kind: input, shape index: {}]
  %s3 = inlined_call_operand.vmem [shape: f32[8,1], index: 3, kind: input, shape index: {}]
  %s4 = inlined_call_operand.vmem [shape: f32[16,72], index: 4, kind: input, shape index: {}]
  %s5 = inlined_call_operand.vmem [shape: f32[16,1], index: 5, kind: input, shape index: {}]
  %s6 = inlined_call_operand.vmem [shape: f32[16,10], index: 6, kind: input, shape index: {}]
  %s7 = inlined_call_operand.vmem [shape: f32[1,10], index: 7, kind: input, shape index: {}]
  %s8 = inlined_call_operand.hbm [shape: f32[2,1,10], index: 8, kind: output, shape index: {}]
  %s9 = sld [smem:[#allocation0]]
  $region65: #{allconvnet_forward.1} parent=0
    _
  %s11 = ssub.s32 1, %s9
  %s12 = scalar_select 0, %s11, %s9
  $region1: #{allconvnet_forward.1} parent=0
    #allocation2 [shape = 'u8[1024]{0}', space=vmem, size = 0x400, scoped, tag = 'output window, operand 0']
    #allocation3 [shape = 's32[2]{0}', space=sflag, size = 0x8, scoped, tag = 'scoped memory for allconvnet_forward.1']
    %13 = vsyncpa [#allocation3], 0
    %s14 = scalar_lea.sflag [#allocation3], 1
    %15 = vsyncpa %s14, 0
    loop: start=0, step=1, limit=4
    $region2: #{allconvnet_forward.1} parent=1 // loop_pre_header
      _
    $region3: #{allconvnet_forward.1} parent=1 // loop_header
      %s17 = sphi 0, %s21
      %p18 = scmp.ge.s32.totalorder %s17, 4
      %s27 = sphi 0, %s29
      %s30 = sphi 0, %s27
      %s31 = sphi 0, %s30
      %s47 = sphi 0, %s31
      %s51 = sphi 0, %s51
      %s53 = sphi 0, %s51
      %s54 = sphi 0, %s53
      %s68 = sphi 0, %s54
      %s72 = sphi 0, %s72
      %s74 = sphi 0, %s72
      %s75 = sphi 0, %s74
      %s89 = sphi 0, %s75
      %s93 = sphi 0, %s93
      %s95 = sphi 0, %s93
      %s96 = sphi 0, %s95
      %s110 = sphi 0, %s96
      %s114 = sphi 0, %s114
      %s116 = sphi 0, %s114
      %s117 = sphi 0, %s116
      %s131 = sphi 0, %s117
      %s135 = sphi 0, %s135
      %s137 = sphi 0, %s135
      %s138 = sphi 0, %s137
      %s152 = sphi 0, %s138
      %s156 = sphi 0, %s156
      %s158 = sphi 0, %s156
      %s159 = sphi 0, %s158
      %s173 = sphi 0, %s159
      %s177 = sphi 0, %s177
      %s179 = sphi 0, %s177
      %s180 = sphi 0, %s179
      %s194 = sphi 0, %s180
      %s200 = sphi 0, %s202
      %s203 = sphi 0, %s200
      %s204 = sphi 0, %s203
      %s220 = sphi 0, %s204
    $region4: #{allconvnet_forward.1} parent=1 // loop_header_branch
      %20 = sbr.rel (%p18) target = $region8
    $region5: #{allconvnet_forward.1} parent=1 // loop_body
      %s22 = ssub.s32 %s17, 1
      %s23 = ssub.s32 %s17, 2
      %s24 = sadd.s32 %s17, 1
      %s25 = ssub.s32 %s17, %s24
      %p26 = scmp.eq.s32.totalorder %s25, 0
      %s28 = sadd.s32 %s27, 1
      %s29 = scalar_select %p26, %s27, %s28
      %p32 = pneg %p26
      %p33 = scmp.eq.s32.totalorder %s17, 1
      %p34 = por %p32, %p33
      %p35 = scmp.ne.s32.totalorder %s27, %s30
      %p36 = scmp.eq.s32.totalorder %s17, 0
      %p37 = por %p35, %p36
      %p38 = scmp.ne.s32.totalorder %s27, %s30
      %p39 = scmp.eq.s32.totalorder %s22, 1
      %p40 = por %p38, %p39
      %p41 = scmp.ne.s32.totalorder %s30, %s31
      %p42 = scmp.eq.s32.totalorder %s22, 0
      %p43 = por %p41, %p42
      %p44 = scmp.ne.s32.totalorder %s30, %s31
      %p45 = scmp.eq.s32.totalorder %s23, 1
      %p46 = por %p44, %p45
      %p48 = scmp.ne.s32.totalorder %s31, %s47
      %p49 = scmp.eq.s32.totalorder %s23, 0
      %p50 = por %p48, %p49
      %s52 = sadd.s32 %s51, 1
      %p55 = scmp.eq.s32.totalorder %s17, 1
      %p56 = scmp.ne.s32.totalorder %s51, %s53
      %p57 = scmp.eq.s32.totalorder %s17, 0
      %p58 = por %p56, %p57
      %p59 = scmp.ne.s32.totalorder %s51, %s53
      %p60 = scmp.eq.s32.totalorder %s22, 1
      %p61 = por %p59, %p60
      %p62 = scmp.ne.s32.totalorder %s53, %s54
      %p63 = scmp.eq.s32.totalorder %s22, 0
      %p64 = por %p62, %p63
      %p65 = scmp.ne.s32.totalorder %s53, %s54
      %p66 = scmp.eq.s32.totalorder %s23, 1
      %p67 = por %p65, %p66
      %p69 = scmp.ne.s32.totalorder %s54, %s68
      %p70 = scmp.eq.s32.totalorder %s23, 0
      %p71 = por %p69, %p70
      %s73 = sadd.s32 %s72, 1
      %p76 = scmp.eq.s32.totalorder %s17, 1
      %p77 = scmp.ne.s32.totalorder %s72, %s74
      %p78 = scmp.eq.s32.totalorder %s17, 0
      %p79 = por %p77, %p78
      %p80 = scmp.ne.s32.totalorder %s72, %s74
      %p81 = scmp.eq.s32.totalorder %s22, 1
      %p82 = por %p80, %p81
      %p83 = scmp.ne.s32.totalorder %s74, %s75
      %p84 = scmp.eq.s32.totalorder %s22, 0
      %p85 = por %p83, %p84
      %p86 = scmp.ne.s32.totalorder %s74, %s75
      %p87 = scmp.eq.s32.totalorder %s23, 1
      %p88 = por %p86, %p87
      %p90 = scmp.ne.s32.totalorder %s75, %s89
      %p91 = scmp.eq.s32.totalorder %s23, 0
      %p92 = por %p90, %p91
      %s94 = sadd.s32 %s93, 1
      %p97 = scmp.eq.s32.totalorder %s17, 1
      %p98 = scmp.ne.s32.totalorder %s93, %s95
      %p99 = scmp.eq.s32.totalorder %s17, 0
      %p100 = por %p98, %p99
      %p101 = scmp.ne.s32.totalorder %s93, %s95
      %p102 = scmp.eq.s32.totalorder %s22, 1
      %p103 = por %p101, %p102
      %p104 = scmp.ne.s32.totalorder %s95, %s96
      %p105 = scmp.eq.s32.totalorder %s22, 0
      %p106 = por %p104, %p105
      %p107 = scmp.ne.s32.totalorder %s95, %s96
      %p108 = scmp.eq.s32.totalorder %s23, 1
      %p109 = por %p107, %p108
      %p111 = scmp.ne.s32.totalorder %s96, %s110
      %p112 = scmp.eq.s32.totalorder %s23, 0
      %p113 = por %p111, %p112
      %s115 = sadd.s32 %s114, 1
      %p118 = scmp.eq.s32.totalorder %s17, 1
      %p119 = scmp.ne.s32.totalorder %s114, %s116
      %p120 = scmp.eq.s32.totalorder %s17, 0
      %p121 = por %p119, %p120
      %p122 = scmp.ne.s32.totalorder %s114, %s116
      %p123 = scmp.eq.s32.totalorder %s22, 1
      %p124 = por %p122, %p123
      %p125 = scmp.ne.s32.totalorder %s116, %s117
      %p126 = scmp.eq.s32.totalorder %s22, 0
      %p127 = por %p125, %p126
      %p128 = scmp.ne.s32.totalorder %s116, %s117
      %p129 = scmp.eq.s32.totalorder %s23, 1
      %p130 = por %p128, %p129
      %p132 = scmp.ne.s32.totalorder %s117, %s131
      %p133 = scmp.eq.s32.totalorder %s23, 0
      %p134 = por %p132, %p133
      %s136 = sadd.s32 %s135, 1
      %p139 = scmp.eq.s32.totalorder %s17, 1
      %p140 = scmp.ne.s32.totalorder %s135, %s137
      %p141 = scmp.eq.s32.totalorder %s17, 0
      %p142 = por %p140, %p141
      %p143 = scmp.ne.s32.totalorder %s135, %s137
      %p144 = scmp.eq.s32.totalorder %s22, 1
      %p145 = por %p143, %p144
      %p146 = scmp.ne.s32.totalorder %s137, %s138
      %p147 = scmp.eq.s32.totalorder %s22, 0
      %p148 = por %p146, %p147
      %p149 = scmp.ne.s32.totalorder %s137, %s138
      %p150 = scmp.eq.s32.totalorder %s23, 1
      %p151 = por %p149, %p150
      %p153 = scmp.ne.s32.totalorder %s138, %s152
      %p154 = scmp.eq.s32.totalorder %s23, 0
      %p155 = por %p153, %p154
      %s157 = sadd.s32 %s156, 1
      %p160 = scmp.eq.s32.totalorder %s17, 1
      %p161 = scmp.ne.s32.totalorder %s156, %s158
      %p162 = scmp.eq.s32.totalorder %s17, 0
      %p163 = por %p161, %p162
      %p164 = scmp.ne.s32.totalorder %s156, %s158
      %p165 = scmp.eq.s32.totalorder %s22, 1
      %p166 = por %p164, %p165
      %p167 = scmp.ne.s32.totalorder %s158, %s159
      %p168 = scmp.eq.s32.totalorder %s22, 0
      %p169 = por %p167, %p168
      %p170 = scmp.ne.s32.totalorder %s158, %s159
      %p171 = scmp.eq.s32.totalorder %s23, 1
      %p172 = por %p170, %p171
      %p174 = scmp.ne.s32.totalorder %s159, %s173
      %p175 = scmp.eq.s32.totalorder %s23, 0
      %p176 = por %p174, %p175
      %s178 = sadd.s32 %s177, 1
      %p181 = scmp.eq.s32.totalorder %s17, 1
      %p182 = scmp.ne.s32.totalorder %s177, %s179
      %p183 = scmp.eq.s32.totalorder %s17, 0
      %p184 = por %p182, %p183
      %p185 = scmp.ne.s32.totalorder %s177, %s179
      %p186 = scmp.eq.s32.totalorder %s22, 1
      %p187 = por %p185, %p186
      %p188 = scmp.ne.s32.totalorder %s179, %s180
      %p189 = scmp.eq.s32.totalorder %s22, 0
      %p190 = por %p188, %p189
      %p191 = scmp.ne.s32.totalorder %s179, %s180
      %p192 = scmp.eq.s32.totalorder %s23, 1
      %p193 = por %p191, %p192
      %p195 = scmp.ne.s32.totalorder %s180, %s194
      %p196 = scmp.eq.s32.totalorder %s23, 0
      %p197 = por %p195, %p196
      %s198 = ssub.s32 %s17, %s24
      %p199 = scmp.eq.s32.totalorder %s198, 0
      %s201 = sadd.s32 %s200, 1
      %s202 = scalar_select %p199, %s200, %s201
      %p205 = pneg %p199
      %p206 = scmp.eq.s32.totalorder %s17, 1
      %p207 = por %p205, %p206
      %p208 = scmp.ne.s32.totalorder %s200, %s203
      %p209 = scmp.eq.s32.totalorder %s17, 0
      %p210 = por %p208, %p209
      %p211 = scmp.ne.s32.totalorder %s200, %s203
      %p212 = scmp.eq.s32.totalorder %s22, 1
      %p213 = por %p211, %p212
      %p214 = scmp.ne.s32.totalorder %s203, %s204
      %p215 = scmp.eq.s32.totalorder %s22, 0
      %p216 = por %p214, %p215
      %p217 = scmp.ne.s32.totalorder %s203, %s204
      %p218 = scmp.eq.s32.totalorder %s23, 1
      %p219 = por %p217, %p218
      %p221 = scmp.ne.s32.totalorder %s204, %s220
      %p222 = scmp.eq.s32.totalorder %s23, 0
      %p223 = por %p221, %p222
      %p224 = scmp.le.s32.totalorder 1, %s17
      %p225 = scmp.lt.s32.totalorder %s17, 3
      %p226 = pnand %p224, %p225
      %p227 = pneg %p226
      // Predicated region
      $region9: #{allconvnet_forward.1} parent=5 // pred_check
        _
      $region10: #{allconvnet_forward.1} parent=5 // pred_check_branch
        %229 = sbr.rel (%p226) target = $region12
      $region11: #{allconvnet_forward.1} parent=5 // pred_region
        %s230 = ssub.s32 %s17, 1
        // Predicated region
        $region13: #{allconvnet_forward.1} parent=11 // pred_check
          %p231 = pneg %p64
        $region14: #{allconvnet_forward.1} parent=11 // pred_check_branch
          %233 = sbr.rel (%p231) target = $region16
        $region15: #{allconvnet_forward.1} parent=11 // pred_region
          _
        $region16: #{allconvnet_forward.1} parent=11 // pred_fallthru
          _
        // Predicated region
        $region17: #{allconvnet_forward.1} parent=11 // pred_check
          %p234 = pneg %p85
        $region18: #{allconvnet_forward.1} parent=11 // pred_check_branch
          %236 = sbr.rel (%p234) target = $region20
        $region19: #{allconvnet_forward.1} parent=11 // pred_region
          _
        $region20: #{allconvnet_forward.1} parent=11 // pred_fallthru
          _
        // Predicated region
        $region21: #{allconvnet_forward.1} parent=11 // pred_check
          %p237 = pneg %p106
        $region22: #{allconvnet_forward.1} parent=11 // pred_check_branch
          %239 = sbr.rel (%p237) target = $region24
        $region23: #{allconvnet_forward.1} parent=11 // pred_region
          _
        $region24: #{allconvnet_forward.1} parent=11 // pred_fallthru
          _
        // Predicated region
        $region25: #{allconvnet_forward.1} parent=11 // pred_check
          %p240 = pneg %p127
        $region26: #{allconvnet_forward.1} parent=11 // pred_check_branch
          %242 = sbr.rel (%p240) target = $region28
        $region27: #{allconvnet_forward.1} parent=11 // pred_region
          _
        $region28: #{allconvnet_forward.1} parent=11 // pred_fallthru
          _
        // Predicated region
        $region29: #{allconvnet_forward.1} parent=11 // pred_check
          %p243 = pneg %p148
        $region30: #{allconvnet_forward.1} parent=11 // pred_check_branch
          %245 = sbr.rel (%p243) target = $region32
        $region31: #{allconvnet_forward.1} parent=11 // pred_region
          _
        $region32: #{allconvnet_forward.1} parent=11 // pred_fallthru
          _
        // Predicated region
        $region33: #{allconvnet_forward.1} parent=11 // pred_check
          %p246 = pneg %p169
        $region34: #{allconvnet_forward.1} parent=11 // pred_check_branch
          %248 = sbr.rel (%p246) target = $region36
        $region35: #{allconvnet_forward.1} parent=11 // pred_region
          _
        $region36: #{allconvnet_forward.1} parent=11 // pred_fallthru
          _
        // Predicated region
        $region37: #{allconvnet_forward.1} parent=11 // pred_check
          %p249 = pneg %p190
        $region38: #{allconvnet_forward.1} parent=11 // pred_check_branch
          %251 = sbr.rel (%p249) target = $region40
        $region39: #{allconvnet_forward.1} parent=11 // pred_region
          _
        $region40: #{allconvnet_forward.1} parent=11 // pred_fallthru
          _
      $region12: #{allconvnet_forward.1} parent=5 // pred_fallthru
        _
      %p252 = scmp.lt.s32.totalorder %s17, 2
      // Predicated region
      $region41: #{allconvnet_forward.1} parent=5 // pred_check
        %p253 = pneg %p252
      $region42: #{allconvnet_forward.1} parent=5 // pred_check_branch
        %255 = sbr.rel (%p253) target = $region44
      $region43: #{allconvnet_forward.1} parent=5 // pred_region
        // Predicated region
        $region45: #{allconvnet_forward.1} parent=43 // pred_check
          %p256 = pneg %p37
        $region46: #{allconvnet_forward.1} parent=43 // pred_check_branch
          %258 = sbr.rel (%p256) target = $region48
        $region47: #{allconvnet_forward.1} parent=43 // pred_region
          %s259 = smul.u32 2, %s17
          %p260 = scmp.lt.s32.totalorder %s259, 3
          %s261 = scalar_select %p260, %s259, 3
          %s262 = smul.addr %s261, 4
          %s263 = scalar_lea.vmem %s0, %s262
          %s264 = smul.u32 2, %s17
        $region48: #{allconvnet_forward.1} parent=43 // pred_fallthru
          _
      $region44: #{allconvnet_forward.1} parent=5 // pred_fallthru
        _
      %p265 = scmp.le.s32.totalorder 1, %s17
      %p266 = scmp.lt.s32.totalorder %s17, 3
      %p267 = pnand %p265, %p266
      %p268 = pneg %p267
      // Predicated region
      $region49: #{allconvnet_forward.1} parent=5 // pred_check
        _
      $region50: #{allconvnet_forward.1} parent=5 // pred_check_branch
        %270 = sbr.rel (%p267) target = $region52
      $region51: #{allconvnet_forward.1} parent=5 // pred_region
        %s271 = ssub.s32 %s17, 1
        %s272 = smul.u32 2, %s22
        %p273 = scmp.lt.s32.totalorder %s272, 3
        %s274 = scalar_select %p273, %s272, 3
        %s275 = smul.addr %s274, 4
        %s276 = scalar_lea.vmem %s0, %s275
        %p277 = pneg %p43
        %p278 = pneg %p40
        %p279 = pneg %p64
        %p280 = pneg %p61
        %p281 = pneg %p85
        %p282 = pneg %p82
        %p283 = pneg %p106
        %p284 = pneg %p103
        %p285 = pneg %p127
        %p286 = pneg %p124
        %p287 = pneg %p148
        %p288 = pneg %p145
        %p289 = pneg %p169
        %p290 = pneg %p166
        %p291 = pneg %p190
        %p292 = pneg %p187
        %p293 = pneg %p216
        %p294 = pneg %p213
        %s295 = sand.u32 %s203, 1
        %s296 = scalar_lea.sflag [#allocation3], %s295
        %s297 = sand.u32 %s203, 1
        %s298 = scalar_lea.vmem [#allocation2], %s297
        %s299 = smul.u32 2, %s22
        %p300 = scmp.lt.s32.totalorder %s299, 3
        %s301 = scalar_select %p300, %s299, 3
        %s302 = smul.addr %s301, 4
        %s303 = scalar_lea.vmem %s0, %s302
        %s304 = smul.u32 2, %s22
        %v305 = vld [vmem:[%s1] sm:$0xff]
        %v306 = vld [vmem:[%s1 + $0x8] sm:$0xff]
        %v307 = vld [vmem:[%s1 + $0x10] sm:$0x1]
        %v308 = vld [vmem:[%s1 + $0x18] sm:$0x1]
        %v309 = vld [vmem:[%s303] sm:$0xff]
        %v310 = vld [vmem:[%s2] sm:$0xff]
        %v311 = vld [vmem:[%s3] sm:$0xff]
        %313 = vst [vmem:[#allocation1] ss:$2 sm:$0xff] %v309
        %v314 = vld.sshfl [vmem:[#allocation1] sm:$0xff pattern:$0x75316420]
        %v315 = vld.sshfl [vmem:[#allocation1 + $0x8] sm:$0xff pattern:$0x75316420]
        %vm318 = vcmask 1043456
        %v319 = vsel %vm318, %v314, 0.0
        %v320 = vsel %vm318, %v315, 0.0
        %v321 = vadd.f32 %v319, %v320
        %322 = vadd.xlane.f32.xlu0 %v321
        %v323 = vpop.xlane.xlu0 %322
        %v324 = vmul.f32 %v309, %v309
        %326 = vst [vmem:[#allocation1] ss:$2 sm:$0xff] %v324
        %v327 = vld.sshfl [vmem:[#allocation1] sm:$0xff pattern:$0x75316420]
        %v328 = vld.sshfl [vmem:[#allocation1 + $0x8] sm:$0xff pattern:$0x75316420]
        %v331 = vsel %vm318, %v327, 0.0
        %v332 = vsel %vm318, %v328, 0.0
        %v333 = vadd.f32 %v331, %v332
        %334 = vadd.xlane.f32.xlu0 %v333
        %v335 = vpop.xlane.xlu0 %334
        %v336 = vmul.f32 %v323, 0.00390625
        %v337 = vmul.f32 %v335, 0.00390625
        %v338 = vmul.f32 %v336, %v336
        %v339 = vsub.f32 %v337, %v338
        %v340 = vmax.f32 %v339, 0.0
        %v343 = vunpack.c.l.s4 839922192
        %v344 = vunpack.c.0.s8 %v343
        %v345 = vperm.slane %v336, %v344
        %v347 = vsub.f32 %v309, %v345
        %v348 = vadd.f32 %v340, 1e-05
        %v349 = vrsqrt.pop %v348
        %v350 = vmul.f32 %v349, %v348
        %v351 = vmul.f32 %v350, %v349
        %v352 = vmul.f32 0.5, %v351
        %v353 = vsub.f32 1.5, %v352
        %v354 = vmul.f32 %v349, %v353
        %vm355 = vweird.f32 %v348
        %vm356 = vweird.f32 %v349
        %vm357 = vmor %vm355, %vm356
        %v358 = vsel %vm357, %v349, %v354
        %v361 = vunpack.c.l.s4 839922192
        %v362 = vunpack.c.0.s8 %v361
        %v363 = vperm.slane %v358, %v362
        %v365 = vmul.f32 %v347, %v363
        %367 = vst [vmem:[#allocation1] ss:$2 sm:$0xff] %v365
        %v368 = vld.sshfl [vmem:[#allocation1] sm:$0xff pattern:$0x75316420]
        %v369 = vld.sshfl [vmem:[#allocation1 + $0x8] sm:$0xff pattern:$0x75316420]
        %372 = vrot.lane.b32.xlu0 %v368, 17
        %v373 = vpop.permute.xlu0 %372
        %374 = vrot.lane.b32.xlu0 %v369, 17
        %v375 = vpop.permute.xlu0 %374
        %v376 = vlaneseq
        %v377 = vand.u32 %v376, 127
        %vm378 = vcmp.lt.s32.totalorder %v377, 17
        %v379 = vsel %vm378, %v373, %v375
        %v380 = vsel %vm378, %v375, %v373
        %v381 = vperm.slane %v305, 0
        %v382 = vperm.slane %v306, 0
        %v383 = vmul.f32 %v380, %v381
        %v384 = vmul.f32 %v379, %v382
        %385 = vst [vmem:[#allocation1] ss:$2 sm:$0xff] %v365
        %v386 = vld.sshfl [vmem:[#allocation1] sm:$0xff pattern:$0x75316420]
        %v387 = vld.sshfl [vmem:[#allocation1 + $0x8] sm:$0xff pattern:$0x75316420]
        %390 = vrot.lane.b32.xlu0 %v386, 16
        %v391 = vpop.permute.xlu0 %390
        %392 = vrot.lane.b32.xlu0 %v387, 16
        %v393 = vpop.permute.xlu0 %392
        %vm394 = vcmp.lt.s32.totalorder %v377, 16
        %v395 = vsel %vm394, %v391, %v393
        %v396 = vsel %vm394, %v393, %v391
        %v397 = vperm.slane %v305, 1
        %v398 = vperm.slane %v306, 1
        %v399 = vmul.f32 %v396, %v397
        %v400 = vmul.f32 %v395, %v398
        %401 = vst [vmem:[#allocation1] ss:$2 sm:$0xff] %v365
        %v402 = vld.sshfl [vmem:[#allocation1] sm:$0xff pattern:$0x75316420]
        %v403 = vld.sshfl [vmem:[#allocation1 + $0x8] sm:$0xff pattern:$0x75316420]
        %406 = vrot.lane.b32.xlu0 %v402, 15
        %v407 = vpop.permute.xlu0 %406
        %408 = vrot.lane.b32.xlu0 %v403, 15
        %v409 = vpop.permute.xlu0 %408
        %vm410 = vcmp.lt.s32.totalorder %v377, 15
        %v411 = vsel %vm410, %v407, %v409
        %v412 = vsel %vm410, %v409, %v407
        %v413 = vperm.slane %v305, 2
        %v414 = vperm.slane %v306, 2
        %v415 = vmul.f32 %v412, %v413
        %v416 = vmul.f32 %v411, %v414
        %417 = vst [vmem:[#allocation1] ss:$2 sm:$0xff] %v365
        %v418 = vld.sshfl [vmem:[#allocation1] sm:$0xff pattern:$0x75316420]
        %v419 = vld.sshfl [vmem:[#allocation1 + $0x8] sm:$0xff pattern:$0x75316420]
        %422 = vrot.lane.b32.xlu0 %v418, 1
        %v423 = vpop.permute.xlu0 %422
        %424 = vrot.lane.b32.xlu0 %v419, 1
        %v425 = vpop.permute.xlu0 %424
        %vm426 = vcmp.lt.s32.totalorder %v377, 1
        %v427 = vsel %vm426, %v423, %v425
        %v428 = vsel %vm426, %v425, %v423
        %v429 = vperm.slane %v305, 3
        %v430 = vperm.slane %v306, 3
        %v431 = vmul.f32 %v428, %v429
        %v432 = vmul.f32 %v427, %v430
        %433 = vst [vmem:[#allocation1] ss:$2 sm:$0xff] %v365
        %v434 = vld.sshfl [vmem:[#allocation1] sm:$0xff pattern:$0x75316420]
        %v435 = vld.sshfl [vmem:[#allocation1 + $0x8] sm:$0xff pattern:$0x75316420]
        %438 = vrot.lane.b32.xlu0 %v434, 127
        %v439 = vpop.permute.xlu0 %438
        %440 = vrot.lane.b32.xlu0 %v435, 127
        %v441 = vpop.permute.xlu0 %440
        %vm442 = vcmp.lt.s32.totalorder %v377, 127
        %v443 = vsel %vm442, %v439, %v441
        %v444 = vsel %vm442, %v441, %v439
        %v445 = vperm.slane %v305, 5
        %v446 = vperm.slane %v306, 5
        %v447 = vmul.f32 %v443, %v445
        %v448 = vmul.f32 %v444, %v446
        %449 = vst [vmem:[#allocation1] ss:$2 sm:$0xff] %v365
        %v450 = vld.sshfl [vmem:[#allocation1] sm:$0xff pattern:$0x75316420]
        %v451 = vld.sshfl [vmem:[#allocation1 + $0x8] sm:$0xff pattern:$0x75316420]
        %454 = vrot.lane.b32.xlu0 %v450, 113
        %v455 = vpop.permute.xlu0 %454
        %456 = vrot.lane.b32.xlu0 %v451, 113
        %v457 = vpop.permute.xlu0 %456
        %vm458 = vcmp.lt.s32.totalorder %v377, 113
        %v459 = vsel %vm458, %v455, %v457
        %v460 = vsel %vm458, %v457, %v455
        %v461 = vperm.slane %v305, 6
        %v462 = vperm.slane %v306, 6
        %v463 = vmul.f32 %v459, %v461
        %v464 = vmul.f32 %v460, %v462
        %465 = vst [vmem:[#allocation1] ss:$2 sm:$0xff] %v365
        %v466 = vld.sshfl [vmem:[#allocation1] sm:$0xff pattern:$0x75316420]
        %v467 = vld.sshfl [vmem:[#allocation1 + $0x8] sm:$0xff pattern:$0x75316420]
        %470 = vrot.lane.b32.xlu0 %v466, 112
        %v471 = vpop.permute.xlu0 %470
        %472 = vrot.lane.b32.xlu0 %v467, 112
        %v473 = vpop.permute.xlu0 %472
        %vm474 = vcmp.lt.s32.totalorder %v377, 112
        %v475 = vsel %vm474, %v471, %v473
        %v476 = vsel %vm474, %v473, %v471
        %v477 = vperm.slane %v305, 7
        %v478 = vperm.slane %v306, 7
        %v479 = vmul.f32 %v475, %v477
        %v480 = vmul.f32 %v476, %v478
        %481 = vst [vmem:[#allocation1] ss:$2 sm:$0xff] %v365
        %v482 = vld.sshfl [vmem:[#allocation1] sm:$0xff pattern:$0x75316420]
        %v483 = vld.sshfl [vmem:[#allocation1 + $0x8] sm:$0xff pattern:$0x75316420]
        %486 = vrot.lane.b32.xlu0 %v482, 111
        %v487 = vpop.permute.xlu0 %486
        %488 = vrot.lane.b32.xlu0 %v483, 111
        %v489 = vpop.permute.xlu0 %488
        %vm490 = vcmp.lt.s32.totalorder %v377, 111
        %v491 = vsel %vm490, %v487, %v489
        %v492 = vsel %vm490, %v489, %v487
        %v493 = vperm.slane %v307, 0
        %v494 = vperm.slane %v308, 0
        %v495 = vmul.f32 %v491, %v493
        %v496 = vmul.f32 %v492, %v494
        %v499 = vrot.slane %v399, 4
        %v500 = vrot.slane %v400, 4
        %v505 = vrot.slane %v431, 4
        %v506 = vrot.slane %v432, 4
        %509 = vst [vmem:[#allocation1] ss:$2 sm:$0xff] %v365
        %v510 = vld.sshfl [vmem:[#allocation1] sm:$0xff pattern:$0x75316420]
        %v511 = vld.sshfl [vmem:[#allocation1 + $0x8] sm:$0xff pattern:$0x75316420]
        %v516 = vrot.slane %v447, 4
        %v517 = vrot.slane %v448, 4
        %v522 = vrot.slane %v479, 4
        %v523 = vrot.slane %v480, 4
        %v526 = vsel %vm318, %v383, %v499
        %v527 = vsel %vm318, %v384, %v500
        %v528 = vsel %vm318, %v415, %v505
        %v529 = vsel %vm318, %v416, %v506
        %v530 = vsel %vm318, %v510, %v516
        %v531 = vsel %vm318, %v511, %v517
        %v532 = vsel %vm318, %v463, %v522
        %v533 = vsel %vm318, %v464, %v523
        %535 = vset.pattern.permute.xlu0 0
        %536 = vperm.xlu0 %535, %v311
        %v537 = vpop.permute.xlu0 %536
        %vm539 = vcmask 293888
        %v541 = vsel %vm539, %v310, 0
        %v544 = vsel %vm318, %v495, 0
        %v547 = vsel %vm318, %v496, 0
        %549 = vmatpush.msra.mxu0 0.0
        %550 = vmatpush.msra.mxu0 0.0
        %551 = vmatpush.msra.mxu0 0.0
        %552 = vmatpush.msra.mxu0 0.0
        %553 = vmatpush.msra.mxu0 0.0
        %554 = vmatpush.msra.mxu0 0.0
        %555 = vmatpush.msra.mxu0 0.0
        %556 = vmatpush.msra.mxu0 0.0
        %557 = vmatpush.msra.mxu0 0.0
        %558 = vmatpush.msra.mxu0 0.0
        %559 = vmatpush.msra.mxu0 0.0
        %560 = vmatpush.msra.mxu0 %v544
        %561 = vmatpush.msra.mxu0 %v532
        %562 = vmatpush.msra.mxu0 %v530
        %563 = vmatpush.msra.mxu0 %v528
        %564 = vmatpush.msra.mxu0 %v526
        %565 = vmatmul.f32.gmra.mxu0 %v541
        %v566 = vpop.f32.mrf.mxu0
        %v567 = vadd.f32 %v537, %v566
        %568 = vdwg.mxu0
        %569 = vmatpush.msra.mxu0 0.0
        %570 = vmatpush.msra.mxu0 0.0
        %571 = vmatpush.msra.mxu0 0.0
        %572 = vmatpush.msra.mxu0 0.0
        %573 = vmatpush.msra.mxu0 0.0
        %574 = vmatpush.msra.mxu0 0.0
        %575 = vmatpush.msra.mxu0 0.0
        %576 = vmatpush.msra.mxu0 0.0
        %577 = vmatpush.msra.mxu0 0.0
        %578 = vmatpush.msra.mxu0 0.0
        %579 = vmatpush.msra.mxu0 0.0
        %580 = vmatpush.msra.mxu0 %v547
        %581 = vmatpush.msra.mxu0 %v533
        %582 = vmatpush.msra.mxu0 %v531
        %583 = vmatpush.msra.mxu0 %v529
        %584 = vmatpush.msra.mxu0 %v527
        %585 = vmatmul.f32.gmra.mxu0 %v541
        %v586 = vpop.f32.mrf.mxu0
        %v587 = vadd.f32 %v537, %v586
        %588 = vdwg.mxu0
        %v589 = vmax.f32 %v567, 0.0
        %v590 = vmax.f32 %v587, 0.0
        %v591 = vld [vmem:[%s4] sm:$0xff]
        %v592 = vld [vmem:[%s4 + $0x8] sm:$0xff]
        %v593 = vld [vmem:[%s5] sm:$0xff]
        %v594 = vld [vmem:[%s5 + $0x8] sm:$0xff]
        %v595 = vadd.f32 %v589, %v590
        %596 = vadd.xlane.f32.xlu0 %v595
        %v597 = vpop.xlane.xlu0 %596
        %v598 = vmul.f32 %v589, %v589
        %v599 = vmul.f32 %v590, %v590
        %v600 = vadd.f32 %v598, %v599
        %601 = vadd.xlane.f32.xlu0 %v600
        %v602 = vpop.xlane.xlu0 %601
        %v603 = vmul.f32 %v597, 0.00390625
        %v604 = vmul.f32 %v602, 0.00390625
        %v605 = vmul.f32 %v603, %v603
        %v606 = vsub.f32 %v604, %v605
        %v607 = vmax.f32 %v606, 0.0
        %v608 = vsub.f32 %v589, %v603
        %v609 = vsub.f32 %v590, %v603
        %v610 = vadd.f32 %v607, 1e-05
        %v611 = vrsqrt.pop %v610
        %v612 = vmul.f32 %v611, %v610
        %v613 = vmul.f32 %v612, %v611
        %v614 = vmul.f32 0.5, %v613
        %v615 = vsub.f32 1.5, %v614
        %v616 = vmul.f32 %v611, %v615
        %vm617 = vweird.f32 %v610
        %vm618 = vweird.f32 %v611
        %vm619 = vmor %vm617, %vm618
        %v620 = vsel %vm619, %v611, %v616
        %v621 = vmul.f32 %v608, %v620
        %v622 = vmul.f32 %v609, %v620
        %623 = vrot.lane.b32.xlu0 %v621, 17
        %v624 = vpop.permute.xlu0 %623
        %625 = vrot.lane.b32.xlu0 %v622, 17
        %v626 = vpop.permute.xlu0 %625
        %v627 = vsel %vm378, %v624, %v626
        %v628 = vsel %vm378, %v626, %v624
        %v629 = vmul.f32 %v628, %v381
        %v630 = vmul.f32 %v627, %v382
        %631 = vrot.lane.b32.xlu0 %v621, 16
        %v632 = vpop.permute.xlu0 %631
        %633 = vrot.lane.b32.xlu0 %v622, 16
        %v634 = vpop.permute.xlu0 %633
        %v635 = vsel %vm394, %v632, %v634
        %v636 = vsel %vm394, %v634, %v632
        %v637 = vmul.f32 %v636, %v397
        %v638 = vmul.f32 %v635, %v398
        %639 = vrot.lane.b32.xlu0 %v621, 15
        %v640 = vpop.permute.xlu0 %639
        %641 = vrot.lane.b32.xlu0 %v622, 15
        %v642 = vpop.permute.xlu0 %641
        %v643 = vsel %vm410, %v640, %v642
        %v644 = vsel %vm410, %v642, %v640
        %v645 = vmul.f32 %v644, %v413
        %v646 = vmul.f32 %v643, %v414
        %647 = vrot.lane.b32.xlu0 %v621, 1
        %v648 = vpop.permute.xlu0 %647
        %649 = vrot.lane.b32.xlu0 %v622, 1
        %v650 = vpop.permute.xlu0 %649
        %v651 = vsel %vm426, %v648, %v650
        %v652 = vsel %vm426, %v650, %v648
        %v653 = vmul.f32 %v652, %v429
        %v654 = vmul.f32 %v651, %v430
        %655 = vrot.lane.b32.xlu0 %v621, 127
        %v656 = vpop.permute.xlu0 %655
        %657 = vrot.lane.b32.xlu0 %v622, 127
        %v658 = vpop.permute.xlu0 %657
        %v659 = vsel %vm442, %v656, %v658
        %v660 = vsel %vm442, %v658, %v656
        %v661 = vmul.f32 %v659, %v445
        %v662 = vmul.f32 %v660, %v446
        %663 = vrot.lane.b32.xlu0 %v621, 113
        %v664 = vpop.permute.xlu0 %663
        %665 = vrot.lane.b32.xlu0 %v622, 113
        %v666 = vpop.permute.xlu0 %665
        %v667 = vsel %vm458, %v664, %v666
        %v668 = vsel %vm458, %v666, %v664
        %v669 = vmul.f32 %v667, %v461
        %v670 = vmul.f32 %v668, %v462
        %671 = vrot.lane.b32.xlu0 %v621, 112
        %v672 = vpop.permute.xlu0 %671
        %673 = vrot.lane.b32.xlu0 %v622, 112
        %v674 = vpop.permute.xlu0 %673
        %v675 = vsel %vm474, %v672, %v674
        %v676 = vsel %vm474, %v674, %v672
        %v677 = vmul.f32 %v675, %v477
        %v678 = vmul.f32 %v676, %v478
        %679 = vrot.lane.b32.xlu0 %v621, 111
        %v680 = vpop.permute.xlu0 %679
        %681 = vrot.lane.b32.xlu0 %v622, 111
        %v682 = vpop.permute.xlu0 %681
        %v683 = vsel %vm490, %v680, %v682
        %v684 = vsel %vm490, %v682, %v680
        %v685 = vmul.f32 %v683, %v493
        %v686 = vmul.f32 %v684, %v494
        %688 = vset.pattern.permute.xlu0 0
        %689 = vperm.xlu0 %688, %v593
        %v690 = vpop.permute.xlu0 %689
        %693 = vset.pattern.permute.xlu0 0
        %694 = vperm.xlu0 %693, %v594
        %v695 = vpop.permute.xlu0 %694
        %vm697 = vcmask 588800
        %v699 = vsel %vm697, %v591, 0
        %v702 = vsel %vm697, %v592, 0
        %704 = vmatpush.msra.mxu0 0.0
        %705 = vmatpush.msra.mxu0 0.0
        %706 = vmatpush.msra.mxu0 0.0
        %707 = vmatpush.msra.mxu0 0.0
        %708 = vmatpush.msra.mxu0 0.0
        %709 = vmatpush.msra.mxu0 0.0
        %710 = vmatpush.msra.mxu0 0.0
        %711 = vmatpush.msra.mxu0 %v685
        %712 = vmatpush.msra.mxu0 %v677
        %713 = vmatpush.msra.mxu0 %v669
        %714 = vmatpush.msra.mxu0 %v661
        %715 = vmatpush.msra.mxu0 %v621
        %716 = vmatpush.msra.mxu0 %v653
        %717 = vmatpush.msra.mxu0 %v645
        %718 = vmatpush.msra.mxu0 %v637
        %719 = vmatpush.msra.mxu0 %v629
        %720 = vmatmul.f32.gmra.mxu0 %v699
        %v721 = vpop.f32.mrf.mxu0
        %v722 = vadd.f32 %v690, %v721
        %723 = vmatmul.f32.gmra.mxu0 %v702
        %v724 = vpop.f32.mrf.mxu0
        %v725 = vadd.f32 %v695, %v724
        %726 = vdwg.mxu0
        %727 = vmatpush.msra.mxu0 0.0
        %728 = vmatpush.msra.mxu0 0.0
        %729 = vmatpush.msra.mxu0 0.0
        %730 = vmatpush.msra.mxu0 0.0
        %731 = vmatpush.msra.mxu0 0.0
        %732 = vmatpush.msra.mxu0 0.0
        %733 = vmatpush.msra.mxu0 0.0
        %734 = vmatpush.msra.mxu0 %v686
        %735 = vmatpush.msra.mxu0 %v678
        %736 = vmatpush.msra.mxu0 %v670
        %737 = vmatpush.msra.mxu0 %v662
        %738 = vmatpush.msra.mxu0 %v622
        %739 = vmatpush.msra.mxu0 %v654
        %740 = vmatpush.msra.mxu0 %v646
        %741 = vmatpush.msra.mxu0 %v638
        %742 = vmatpush.msra.mxu0 %v630
        %743 = vmatmul.f32.gmra.mxu0 %v699
        %v744 = vpop.f32.mrf.mxu0
        %v745 = vadd.f32 %v690, %v744
        %746 = vmatmul.f32.gmra.mxu0 %v702
        %v747 = vpop.f32.mrf.mxu0
        %v748 = vadd.f32 %v695, %v747
        %749 = vdwg.mxu0
        %v750 = vmax.f32 %v722, 0.0
        %v751 = vmax.f32 %v745, 0.0
        %v752 = vmax.f32 %v725, 0.0
        %v753 = vmax.f32 %v748, 0.0
        %v754 = vadd.f32 %v750, %v751
        %755 = vadd.xlane.f32.xlu0 %v754
        %v756 = vpop.xlane.xlu0 %755
        %v757 = vadd.f32 %v752, %v753
        %758 = vadd.xlane.f32.xlu0 %v757
        %v759 = vpop.xlane.xlu0 %758
        %v760 = vmul.f32 %v756, 0.00390625
        %v761 = vmul.f32 %v759, 0.00390625
        %762 = vxpose.xlu0.b32.start [1/16] %v760, 128
        %763 = vxpose.xlu0.b32.cont [2/16] %v761, 128
        %764 = vxpose.xlu0.b32.cont [3/16] 0.0, 128
        %765 = vxpose.xlu0.b32.cont [4/16] 0.0, 128
        %766 = vxpose.xlu0.b32.cont [5/16] 0.0, 128
        %767 = vxpose.xlu0.b32.cont [6/16] 0.0, 128
        %768 = vxpose.xlu0.b32.cont [7/16] 0.0, 128
        %769 = vxpose.xlu0.b32.cont [8/16] 0.0, 128
        %770 = vxpose.xlu0.b32.cont [9/16] 0.0, 128
        %771 = vxpose.xlu0.b32.cont [10/16] 0.0, 128
        %772 = vxpose.xlu0.b32.cont [11/16] 0.0, 128
        %773 = vxpose.xlu0.b32.cont [12/16] 0.0, 128
        %774 = vxpose.xlu0.b32.cont [13/16] 0.0, 128
        %775 = vxpose.xlu0.b32.cont [14/16] 0.0, 128
        %776 = vxpose.xlu0.b32.cont [15/16] 0.0, 128
        %777 = vxpose.xlu0.b32.end [16/16] 0.0, 128
        %v778 = vpop.trf.xlu0
        %v779 = vpop.trf.xlu0
        %v780 = vpop.trf.xlu0
        %v781 = vpop.trf.xlu0
        %v782 = vpop.trf.xlu0
        %v783 = vpop.trf.xlu0
        %v784 = vpop.trf.xlu0
        %v785 = vpop.trf.xlu0
        %v786 = vpop.trf.xlu0
        %v787 = vpop.trf.xlu0
        %v788 = vpop.trf.xlu0
        %v789 = vpop.trf.xlu0
        %v790 = vpop.trf.xlu0
        %v791 = vpop.trf.xlu0
        %v792 = vpop.trf.xlu0
        %v793 = vpop.trf.xlu0
        %v794 = vld [vmem:[%s6] sm:$0xff]
        %v795 = vld [vmem:[%s6 + $0x8] sm:$0xff]
        %v796 = vld [vmem:[%s7] sm:$0x1]
        %vm797 = vcmask 130048
        %v799 = vsel %vm797, %v778, 0
        %801 = vmatpush.msra.mxu0 0.0
        %802 = vmatpush.msra.mxu0 0.0
        %803 = vmatpush.msra.mxu0 0.0
        %804 = vmatpush.msra.mxu0 0.0
        %805 = vmatpush.msra.mxu0 0.0
        %806 = vmatpush.msra.mxu0 0.0
        %807 = vmatpush.msra.mxu0 0.0
        %808 = vmatpush.msra.mxu0 0.0
        %809 = vmatpush.msra.mxu0 0.0
        %810 = vmatpush.msra.mxu0 0.0
        %811 = vmatpush.msra.mxu0 0.0
        %812 = vmatpush.msra.mxu0 0.0
        %813 = vmatpush.msra.mxu0 0.0
        %814 = vmatpush.msra.mxu0 0.0
        %815 = vmatpush.msra.mxu0 %v795
        %816 = vmatpush.msra.mxu0 %v794
        %817 = vmatmul.f32.gmra.mxu0 %v799
        %v818 = vpop.f32.mrf.mxu0
        %v819 = vadd.f32 %v796, %v818
        %820 = vdwg.mxu0
        %vm821 = vcmask 73728
        %822 = vst.msk [vmem:[%s298] sm:$0x1] %vm821, %v819
        %s823 = sand.u32 %s203, 1
        %s824 = scalar_lea.sflag [#allocation3], %s823
        %s825 = sand.u32 %s203, 1
        %s826 = scalar_lea.vmem [#allocation2], %s825
        // Predicated region
        $region53: #{allconvnet_forward.1} parent=51 // pred_check
          %p827 = pneg %p213
        $region54: #{allconvnet_forward.1} parent=51 // pred_check_branch
          %829 = sbr.rel (%p827) target = $region56
        $region55: #{allconvnet_forward.1} parent=51 // pred_region
          %831 = vsyncadd %s824, 0
          %s832 = scalar_lea.hbm %s8, %s22
          %s834 = sshll.u32 %s826, 4
          %s835 = int_to_ptr.vmem [resolvable:$true] %s834
          %s836 = sshll.u32 %s832, 4
          %s837 = int_to_ptr.hbm [resolvable:$true] %s836
          %839 = dma.vmem_to_hbm [thread:$0]  %s835, 16, %s837, %s824
        $region56: #{allconvnet_forward.1} parent=51 // pred_fallthru
          _
      $region52: #{allconvnet_forward.1} parent=5 // pred_fallthru
        _
      %p840 = scmp.le.s32.totalorder 2, %s17
      // Predicated region
      $region57: #{allconvnet_forward.1} parent=5 // pred_check
        %p841 = pneg %p840
      $region58: #{allconvnet_forward.1} parent=5 // pred_check_branch
        %843 = sbr.rel (%p841) target = $region60
      $region59: #{allconvnet_forward.1} parent=5 // pred_region
        %s844 = ssub.s32 %s17, 2
        // Predicated region
        $region61: #{allconvnet_forward.1} parent=59 // pred_check
          %p845 = pneg %p219
        $region62: #{allconvnet_forward.1} parent=59 // pred_check_branch
          %847 = sbr.rel (%p845) target = $region64
        $region63: #{allconvnet_forward.1} parent=59 // pred_region
          %s848 = sand.u32 %s204, 1
          %s849 = scalar_lea.sflag [#allocation3], %s848
          %s850 = sand.u32 %s204, 1
          %s851 = scalar_lea.vmem [#allocation2], %s850
          %853 = dma.done %s849, 16
        $region64: #{allconvnet_forward.1} parent=59 // pred_fallthru
          _
      $region60: #{allconvnet_forward.1} parent=5 // pred_fallthru
        _
    $region6: #{allconvnet_forward.1} parent=1 // loop_footer
      %s21 = sadd.s32 1, %s17
    $region7: #{allconvnet_forward.1} parent=1 // loop_footer_branch
      %16 = sbr.rel target = $region3
    $region8: #{allconvnet_forward.1} parent=1 // loop_exit
      _
    %854 = vsyncpa [#allocation3], 1
    %s855 = scalar_lea.sflag [#allocation3], 1
    %856 = vsyncpa %s855, 1

</llo_original>
